<compile_context>
chip_gen: v7x
topology: tpu7x:2x2x1
jax: 0.10.0
libtpu: 0.0.40
codegen_flags: <defaults>
</compile_context>

<pallas_src>
import math

import jax
import jax.numpy as jnp
import numpy as np
from jax import lax
from jax.experimental import pallas as pl
from jax.experimental.pallas import tpu as pltpu


def _round_up(x, m):
    return ((x + m - 1) // m) * m


def _cdiv(a, b):
    return (a + b - 1) // b


def _vmem_capacity_bytes():
    """Physical VMEM of the attached TPU (conservative default if unknown)."""
    try:
        info = pltpu.get_tpu_info()
        cap = getattr(info, "vmem_capacity_bytes", None)
        if cap:
            return int(cap)
    except Exception:
        pass
    return 64 * 1024 * 1024  # v7x per-TensorCore budget (smallest current gen)


# ---------------------------------------------------------------------------
# Kernel 1: block-wise rotation  filt^T[i_block] = Q_i @ W[:, i_block]^T
# ---------------------------------------------------------------------------
def _block_rotate_kernel(q_ref, w_ref, f_ref):
    q = q_ref[0]                                   # (blk, blk), compute dtype
    w = w_ref[...].astype(q.dtype)                 # (tn, blk), cast on the VPU
    # Contract Q's axis 1 with the W tile's axis 1 (trans_b on the MXU) so W is
    # read in its natural (out, in) layout -- no host transpose / pad pass.
    f_ref[...] = lax.dot_general(
        q, w, dimension_numbers=(((1,), (1,)), ((), ())),
        preferred_element_type=jnp.float32).astype(f_ref.dtype)


def _rotate_weight(weight, q, blk, oft_r, compute_dtype, vmem_limit):
    """filt^T = block_diag(Q_0..Q_{r-1}) @ W^T, computed per block (the dense
    (in, in) block-diagonal matrix is never materialized)."""
    out_features, in_features = weight.shape
    if blk % 128 == 0:
        tn = out_features if out_features <= 512 else 512
        return pl.pallas_call(
            _block_rotate_kernel,
            out_shape=jax.ShapeDtypeStruct((in_features, out_features),
                                           compute_dtype),
            grid_spec=pltpu.PrefetchScalarGridSpec(
                num_scalar_prefetch=0,
                grid=(oft_r, _cdiv(out_features, tn)),
                in_specs=[
                    pl.BlockSpec((1, blk, blk), lambda i, j: (i, 0, 0)),
                    pl.BlockSpec((tn, blk), lambda i, j: (j, i)),   # W as-is
                ],
                out_specs=pl.BlockSpec((blk, tn), lambda i, j: (i, j)),
            ),
            compiler_params=pltpu.CompilerParams(
                dimension_semantics=("parallel", "parallel"),
                vmem_limit_bytes=vmem_limit),
        )(q.astype(compute_dtype), weight)
    # blk < 128: the 128x128 / 256x256 MXU would be mostly empty and the many
    # tiny grid steps (~0.35 us each) would dominate; the rotation is
    # negligible FLOPs vs. the main GEMM, so do it as one XLA einsum.
    w_r = weight.astype(jnp.float32).reshape(out_features, oft_r, blk)
    filt_t = jnp.einsum('rij,nrj->rin', q, w_r)    # (r, blk, out)
    return filt_t.reshape(in_features, out_features).astype(compute_dtype)


# ---------------------------------------------------------------------------
# Kernel 2: bias-fused tiled GEMM  out = x @ filt^T + bias
# ---------------------------------------------------------------------------
def _oft_matmul_bias_kernel(x_ref, f_ref, b_ref, o_ref, acc_ref):
    k = pl.program_id(2)
    # Cast the activation tile in-kernel (VPU work hidden under the MXU) rather
    # than materializing a padded low-precision copy of x in HBM.
    prod = jnp.dot(x_ref[...].astype(f_ref.dtype), f_ref[...],
                   preferred_element_type=jnp.float32)

    @pl.when(k == 0)
    def _():
        acc_ref[...] = prod            # overwrite: saves zero-fill + add on k==0

    @pl.when(k > 0)
    def _():
        acc_ref[...] += prod

    @pl.when(k == pl.num_programs(2) - 1)
    def _():
        o_ref[...] = (acc_ref[...] + b_ref[...]).astype(o_ref.dtype)


def _choose_tk(K, tk_max):
    """Pick a K tile that divides K exactly (no K padding of x / filt)."""
    tk_max = max(128, (tk_max // 128) * 128)
    if K <= tk_max:
        return K, K                                   # single K step, no pad
    for cand in range(tk_max, 127, -128):
        if K % cand == 0:
            return cand, K                            # exact divisor, no pad
    return tk_max, _round_up(K, tk_max)               # rare fallback: pad K


def _split_for_two_cores(M, N, tm, tn, sub):
    """v7x has 2 TensorCores: ensure >= 2 parallel (i, j) tiles when possible,
    preferring to split N when M is small."""
    while _cdiv(M, tm) * _cdiv(N, tn) < 2:
        if tn % 256 == 0 and _cdiv(N, tn // 2) > _cdiv(N, tn):
            tn //= 2
        elif tm % (2 * sub) == 0 and _cdiv(M, tm // 2) > _cdiv(M, tm):
            tm //= 2
        else:
            break
    return tm, tn


def oft_linear_forward(x, R, weight, bias, *, oft_r=4, block_share=False,
                       compute_dtype=jnp.bfloat16, tm=None, tn=None, tk=None):
    """Pallas implementation of OFTLinearLayer.forward."""
    out_features, in_features = weight.shape
    assert in_features % oft_r == 0
    blk = in_features // oft_r
    out_dtype = x.dtype

    # --- Cayley transform: tiny (blk, blk) matrices; needs a matrix inverse.
    # TODO(synk): jnp.linalg.inv has no clean Pallas equivalent; stays in XLA.
    # The inverse runs in f32 even if R is low precision (numerical safety).
    Rf = R.astype(jnp.float32)
    if block_share:
        # NOTE: the module's single-block cayley() is (I+S) @ inv(I-S) while the
        # batched path is (I-S) @ inv(I+S); the asymmetry matches the module.
        skew = 0.5 * (Rf - Rf.T)
        eye = jnp.eye(Rf.shape[0], dtype=jnp.float32)
        q = (eye + skew) @ jnp.linalg.inv(eye - skew)
        q = jnp.broadcast_to(q[None], (oft_r, blk, blk))
    else:
        skew = 0.5 * (Rf - jnp.swapaxes(Rf, 1, 2))
        eye = jnp.eye(Rf.shape[1], dtype=jnp.float32)[None]
        q = jnp.matmul(eye - skew, jnp.linalg.inv(eye + skew))

    # --- VMEM-capacity-aware tile targets (128 MiB v5e/v6e vs 64 MiB/TC v7x).
    cap = _vmem_capacity_bytes()
    big_vmem = cap >= 100 * 1024 * 1024
    tm_t = tm or 512
    tn_t = tn or (2048 if big_vmem else 1024)
    tk_t = tk or (2048 if big_vmem else 1024)
    vmem_limit = (64 if big_vmem else 48) * 1024 * 1024

    # --- rotation (Pallas MXU kernel for blk >= 128, XLA einsum otherwise).
    filt_t = _rotate_weight(weight, q, blk, oft_r, compute_dtype, vmem_limit)

    # --- main GEMM tiling.
    lead = x.shape[:-1]
    M = int(math.prod(lead)) if lead else 1
    N, K = out_features, in_features
    x2d = x.reshape(M, K)                       # native dtype; no HBM copy

    itemsize = jnp.dtype(x.dtype).itemsize
    sub = {4: 8, 2: 16, 1: 32}.get(itemsize, 8)     # dtype sublane pack
    tm_v = min(max(sub, (tm_t // sub) * sub), _round_up(M, sub))
    tn_v = N if N <= tn_t else tn_t                 # multiple of 128 or == N
    tk_v, K_pad = _choose_tk(K, tk_t)
    tm_v, tn_v = _split_for_two_cores(M, N, tm_v, tn_v, sub)

    if K_pad != K:                    # rare fallback (K > tk_t and K % 128 != 0)
        x2d = jnp.pad(x2d, ((0, 0), (0, K_pad - K)))
        filt_t = jnp.pad(filt_t, ((0, K_pad - K), (0, 0)))

    if bias is None:
        bias2d = jnp.zeros((1, N), jnp.float32)
    else:
        bias2d = bias.astype(jnp.float32).reshape(1, N)

    grid_m, grid_n, grid_k = _cdiv(M, tm_v), _cdiv(N, tn_v), K_pad // tk_v
    f_bytes = jnp.dtype(compute_dtype).itemsize
    cost = pl.CostEstimate(
        flops=2 * M * K * N,
        transcendentals=0,
        bytes_accessed=int(grid_n * M * K * itemsize        # x read per N tile
                           + grid_m * K_pad * N * f_bytes   # filt read per M tile
                           + M * N * jnp.dtype(out_dtype).itemsize),
    )

    out2d = pl.pallas_call(
        _oft_matmul_bias_kernel,
        out_shape=jax.ShapeDtypeStruct((M, N), out_dtype),
        grid_spec=pltpu.PrefetchScalarGridSpec(
            num_scalar_prefetch=0,
            grid=(grid_m, grid_n, grid_k),
            in_specs=[
                pl.BlockSpec((tm_v, tk_v), lambda i, j, k: (i, k)),   # x rows
                pl.BlockSpec((tk_v, tn_v), lambda i, j, k: (k, j)),   # rotated W^T
                pl.BlockSpec((1, tn_v), lambda i, j, k: (0, j)),      # bias (f32)
            ],
            out_specs=pl.BlockSpec((tm_v, tn_v), lambda i, j, k: (i, j)),
            scratch_shapes=[pltpu.VMEM((tm_v, tn_v), jnp.float32)],
        ),
        compiler_params=pltpu.CompilerParams(
            dimension_semantics=("parallel", "parallel", "arbitrary"),
            vmem_limit_bytes=vmem_limit,
        ),
        cost_estimate=cost,
    )(x2d, filt_t, bias2d)

    return out2d.reshape(*lead, out_features)


def _reference(x, R, weight, bias, oft_r, block_share):
    # Pure-JAX mirror of the PyTorch forward (dense block-diagonal).
    if block_share:
        skew = 0.5 * (R - R.T)
        eye = jnp.eye(R.shape[0], dtype=jnp.float32)
        Q = (eye + skew) @ jnp.linalg.inv(eye - skew)
        blocks = [Q] * oft_r
    else:
        skew = 0.5 * (R - jnp.swapaxes(R, 1, 2))
        eye = jnp.eye(R.shape[1], dtype=jnp.float32)[None]
        Q = jnp.matmul(eye - skew, jnp.linalg.inv(eye + skew))
        blocks = [Q[i] for i in range(oft_r)]
    bd = jax.scipy.linalg.block_diag(*blocks)
    filt = (bd @ weight.T).T
    out = x.reshape(-1, weight.shape[1]) @ filt.T
    if bias is not None:
        out = out + bias
    return out.reshape(*x.shape[:-1], weight.shape[0])


if __name__ == "__main__":
    key = jax.random.PRNGKey(0)

    # --- Case 1: nn.Linear(32, 32) wrapped with oft_r=4 (blk = 8 < 128 ->
    #     XLA einsum rotation + Pallas bias-fused GEMM).
    batch, seq, in_f, out_f, oft_r = 2, 8, 32, 32, 4
    blk = in_f // oft_r
    k_x, k_r, k_w, k_b = jax.random.split(key, 4)
    x = jax.random.normal(k_x, (batch, seq, in_f), dtype=jnp.float32)
    R = 0.01 * jax.random.normal(k_r, (oft_r, blk, blk), dtype=jnp.float32)
    weight = 0.02 * jax.random.normal(k_w, (out_f, in_f), dtype=jnp.float32)
    bias = 0.02 * jax.random.normal(k_b, (out_f,), dtype=jnp.float32)

    ref = _reference(x, R, weight, bias, oft_r, block_share=False)

    out_f32 = oft_linear_forward(x, R, weight, bias, oft_r=oft_r,
                                 block_share=False, compute_dtype=jnp.float32)
    jax.block_until_ready(out_f32)
    np.testing.assert_allclose(np.asarray(out_f32), np.asarray(ref),
                               rtol=1e-4, atol=1e-5)

    out_bf16 = oft_linear_forward(x, R, weight, bias, oft_r=oft_r,
                                  block_share=False, compute_dtype=jnp.bfloat16)
    jax.block_until_ready(out_bf16)
    np.testing.assert_allclose(np.asarray(out_bf16), np.asarray(ref),
                               rtol=5e-2, atol=5e-3)

    # --- Case 2: block_share=True (module's single-block cayley convention).
    R_shared = 0.01 * jax.random.normal(k_r, (blk, blk), dtype=jnp.float32)
    out_sh = oft_linear_forward(x, R_shared, weight, bias, oft_r=oft_r,
                                block_share=True, compute_dtype=jnp.float32)
    jax.block_until_ready(out_sh)
    ref_sh = _reference(x, R_shared, weight, bias, oft_r, block_share=True)
    np.testing.assert_allclose(np.asarray(out_sh), np.asarray(ref_sh),
                               rtol=1e-4, atol=1e-5)

    # --- Case 3: blk = 128 -> exercises the Pallas MXU rotation kernel
    #     (W read in natural (out, in) layout, trans_b contraction).
    in_f2, out_f2, oft_r2 = 256, 384, 2
    blk2 = in_f2 // oft_r2
    k_x2, k_r2, k_w2, k_b2 = jax.random.split(jax.random.PRNGKey(1), 4)
    x2 = jax.random.normal(k_x2, (batch, seq, in_f2), dtype=jnp.float32)
    R2 = 0.01 * jax.random.normal(k_r2, (oft_r2, blk2, blk2), dtype=jnp.float32)
    w2 = 0.02 * jax.random.normal(k_w2, (out_f2, in_f2), dtype=jnp.float32)
    b2 = 0.02 * jax.random.normal(k_b2, (out_f2,), dtype=jnp.float32)
    out2 = oft_linear_forward(x2, R2, w2, b2, oft_r=oft_r2,
                              block_share=False, compute_dtype=jnp.float32)
    jax.block_until_ready(out2)
    ref2 = _reference(x2, R2, w2, b2, oft_r2, block_share=False)
    np.testing.assert_allclose(np.asarray(out2), np.asarray(ref2),
                               rtol=1e-4, atol=1e-4)

    print("KERNEL_OK")
</pallas_src>

<mosaic_0001>
module attributes {stable_mosaic.version = 11 : i64} {
  func.func @_oft_matmul_bias_kernel(%arg0: i32, %arg1: i32, %arg2: i32, %arg3: memref<8x32xf32, #tpu.memory_space<vmem>>, %arg4: memref<32x32xf32, #tpu.memory_space<vmem>>, %arg5: memref<1x32xf32, #tpu.memory_space<vmem>>, %arg6: memref<8x32xf32, #tpu.memory_space<vmem>>, %arg7: memref<8x32xf32, #tpu.memory_space<vmem>>) attributes {dimension_semantics = [#tpu.dimension_semantics<parallel>, #tpu.dimension_semantics<parallel>, #tpu.dimension_semantics<arbitrary>], iteration_bounds = array<i64: 2, 1, 1>, scalar_prefetch = 0 : i64, scratch_operands = 1 : i64, tpu.core_type = #tpu.core_type<tc>, window_params = [{transform_indices = @transform_0, window_bounds = array<i64: 8, 32>}, {transform_indices = @transform_1, window_bounds = array<i64: 32, 32>}, {transform_indices = @transform_2, window_bounds = array<i64: 1, 32>}, {transform_indices = @transform_3, window_bounds = array<i64: 8, 32>}]} {
    %c0 = arith.constant 0 : index
    %c0_0 = arith.constant 0 : index
    %0 = vector.load %arg3[%c0, %c0_0] : memref<8x32xf32, #tpu.memory_space<vmem>>, vector<8x32xf32>
    %c0_1 = arith.constant 0 : index
    %c0_2 = arith.constant 0 : index
    %1 = vector.load %arg4[%c0_1, %c0_2] : memref<32x32xf32, #tpu.memory_space<vmem>>, vector<32x32xf32>
    %cst = arith.constant dense<0.000000e+00> : vector<8x32xf32>
    %2 = tpu.matmul %0, %1, %cst {dimension_numbers = #tpu.dot_dimension_numbers<[1], [0], [0], [1], [0, 0, 1, 1], [], []>} : vector<8x32xf32>, vector<32x32xf32>, vector<8x32xf32> -> vector<8x32xf32>
    %c0_i32 = arith.constant 0 : i32
    %3 = arith.cmpi eq, %arg2, %c0_i32 : i32
    %4 = arith.extui %3 : i1 to i32
    %c0_i32_3 = arith.constant 0 : i32
    %5 = arith.cmpi ne, %4, %c0_i32_3 : i32
    scf.if %5 {
      %c0_8 = arith.constant 0 : index
      %c0_9 = arith.constant 0 : index
      %12 = vector.load %arg7[%c0_8, %c0_9] : memref<8x32xf32, #tpu.memory_space<vmem>>, vector<8x32xf32>
      tpu.vector_store %arg7[%c0_8, %c0_9], %2 {strides = array<i32>} : memref<8x32xf32, #tpu.memory_space<vmem>>, vector<8x32xf32>,
    } else {
    }
    %c0_i32_4 = arith.constant 0 : i32
    %6 = arith.cmpi sgt, %arg2, %c0_i32_4 : i32
    %7 = arith.extui %6 : i1 to i32
    %c0_i32_5 = arith.constant 0 : i32
    %8 = arith.cmpi ne, %7, %c0_i32_5 : i32
    scf.if %8 {
      %c0_8 = arith.constant 0 : index
      %c0_9 = arith.constant 0 : index
      %12 = vector.load %arg7[%c0_8, %c0_9] : memref<8x32xf32, #tpu.memory_space<vmem>>, vector<8x32xf32>
      %13 = arith.addf %12, %2 : vector<8x32xf32>
      %c0_10 = arith.constant 0 : index
      %c0_11 = arith.constant 0 : index
      %14 = vector.load %arg7[%c0_10, %c0_11] : memref<8x32xf32, #tpu.memory_space<vmem>>, vector<8x32xf32>
      tpu.vector_store %arg7[%c0_10, %c0_11], %13 {strides = array<i32>} : memref<8x32xf32, #tpu.memory_space<vmem>>, vector<8x32xf32>,
    } else {
    }
    %c0_i32_6 = arith.constant 0 : i32
    %9 = arith.cmpi eq, %arg2, %c0_i32_6 : i32
    %10 = arith.extui %9 : i1 to i32
    %c0_i32_7 = arith.constant 0 : i32
    %11 = arith.cmpi ne, %10, %c0_i32_7 : i32
    scf.if %11 {
      %c0_8 = arith.constant 0 : index
      %c0_9 = arith.constant 0 : index
      %12 = vector.load %arg7[%c0_8, %c0_9] : memref<8x32xf32, #tpu.memory_space<vmem>>, vector<8x32xf32>
      %c0_10 = arith.constant 0 : index
      %c0_11 = arith.constant 0 : index
      %13 = vector.load %arg5[%c0_10, %c0_11] : memref<1x32xf32, #tpu.memory_space<vmem>>, vector<1x32xf32>
      %14 = vector.broadcast %13 : vector<1x32xf32> to vector<8x32xf32>
      %15 = arith.addf %12, %14 : vector<8x32xf32>
      %c0_12 = arith.constant 0 : index
      %c0_13 = arith.constant 0 : index
      %16 = vector.load %arg6[%c0_12, %c0_13] : memref<8x32xf32, #tpu.memory_space<vmem>>, vector<8x32xf32>
      tpu.vector_store %arg6[%c0_12, %c0_13], %15 {strides = array<i32>} : memref<8x32xf32, #tpu.memory_space<vmem>>, vector<8x32xf32>,
    } else {
    }
    return
  }
  func.func @transform_0(%arg0: i32, %arg1: i32, %arg2: i32) -> (i32, i32) {
    %c0_i32 = arith.constant 0 : i32
    return %arg0, %arg2 : i32, i32
  }
  func.func @transform_1(%arg0: i32, %arg1: i32, %arg2: i32) -> (i32, i32) {
    %c0_i32 = arith.constant 0 : i32
    return %arg2, %arg1 : i32, i32
  }
  func.func @transform_2(%arg0: i32, %arg1: i32, %arg2: i32) -> (i32, i32) {
    %c0_i32 = arith.constant 0 : i32
    %c0_i32_0 = arith.constant 0 : i32
    return %c0_i32, %arg1 : i32, i32
  }
  func.func @transform_3(%arg0: i32, %arg1: i32, %arg2: i32) -> (i32, i32) {
    %c0_i32 = arith.constant 0 : i32
    return %arg0, %arg1 : i32, i32
  }
}

</mosaic_0001>

<llo_original>
// kernel: tpu_custom_call.1
$region0: #{tpu_custom_call.1}
  #allocation0 [shape = 'u32[]', space=smem, size = 0x4, offset = 0x4, fixed_abs, tag = 'smem constant byte address 0x4 - core index']
  #allocation1 [shape = 'u32[144,128]{1,0:T(1,128)}', space=vmem, size = 0x12000, scoped, tag = 'internal scratch']
  #allocation2 [shape = 'f32[8,32]{1,0:T(8,128)}', space=vmem, size = 0x1000, scoped, tag = 'scratch operand']
  %s0 = inlined_call_operand.hbm [shape: f32[16,32], index: 0, kind: input, shape index: {}]
  %s1 = inlined_call_operand.hbm [shape: f32[32,32], index: 1, kind: input, shape index: {}]
  %s2 = inlined_call_operand.vmem [shape: f32[1,32], index: 2, kind: input, shape index: {}]
  %s3 = inlined_call_operand.hbm [shape: f32[16,32], index: 3, kind: output, shape index: {}]
  %s4 = sld [smem:[#allocation0]]
  $region65: #{tpu_custom_call.1} parent=0
    _
  %s6 = ssub.s32 1, %s4
  %s7 = scalar_select 0, %s6, %s4
  $region1: #{tpu_custom_call.1} parent=0
    #allocation3 [shape = 'u8[8192]{0}', space=vmem, size = 0x2000, scoped, tag = 'input window, operand 0']
    #allocation4 [shape = 's32[2]{0}', space=sflag, size = 0x8, scoped, tag = 'scoped memory for tpu_custom_call.1']
    #allocation5 [shape = 's32[2]{0}', space=sflag, size = 0x8, scoped, tag = 'scoped memory for tpu_custom_call.1']
    #allocation6 [shape = 'u8[16384]{0}', space=vmem, size = 0x4000, scoped, tag = 'input window, operand 1, single buffered']
    #allocation7 [shape = 's32[1]{0}', space=sflag, size = 0x4, scoped, tag = 'scoped memory for tpu_custom_call.1']
    #allocation8 [shape = 'u8[8192]{0}', space=vmem, size = 0x2000, scoped, tag = 'output window, operand 0']
    %8 = vsyncpa [#allocation4], 0
    %s9 = scalar_lea.sflag [#allocation4], 1
    %10 = vsyncpa %s9, 0
    %11 = vsyncpa [#allocation7], 0
    %12 = vsyncpa [#allocation5], 0
    %s13 = scalar_lea.sflag [#allocation5], 1
    %14 = vsyncpa %s13, 0
    loop: start=0, step=1, limit=4
    $region2: #{tpu_custom_call.1} parent=1 // loop_pre_header
      _
    $region3: #{tpu_custom_call.1} parent=1 // loop_header
      %s16 = sphi 0, %s20
      %p17 = scmp.ge.s32.totalorder %s16, 4
      %s23 = sphi 0, %s42
      %s24 = sphi 0, %s38
      %s25 = sphi 0, %s34
      %s26 = sphi 0, %s23
      %s27 = sphi 0, %s24
      %s28 = sphi 0, %s25
      %s29 = sphi 0, %s26
      %s30 = sphi 0, %s27
      %s31 = sphi 0, %s28
      %s47 = sphi 0, %s49
      %s50 = sphi 0, %s47
      %s51 = sphi 0, %s50
      %s67 = sphi 0, %s51
      %s75 = sphi 0, %s77
      %s78 = sphi 0, %s75
      %s79 = sphi 0, %s78
      %s95 = sphi 0, %s79
      %s101 = sphi 0, %s103
      %s104 = sphi 0, %s101
      %s105 = sphi 0, %s104
      %s121 = sphi 0, %s105
      %s129 = sphi 0, %s131
      %s132 = sphi 0, %s129
      %s133 = sphi 0, %s132
      %s149 = sphi 0, %s133
    $region4: #{tpu_custom_call.1} parent=1 // loop_header_branch
      %19 = sbr.rel (%p17) target = $region8
    $region5: #{tpu_custom_call.1} parent=1 // loop_body
      %s21 = ssub.s32 %s16, 1
      %s22 = ssub.s32 %s16, 2
      %s32 = sadd.s32 1, %s25
      %p33 = scmp.ge.s32.totalorder %s32, 1
      %s34 = scalar_select %p33, 0, %s32
      %s35 = sadd.s32 1, %s24
      %s36 = scalar_select %p33, %s35, %s24
      %p37 = scmp.ge.s32.totalorder %s36, 1
      %s38 = scalar_select %p37, 0, %s36
      %s39 = sadd.s32 1, %s23
      %s40 = scalar_select %p37, %s39, %s23
      %p41 = scmp.ge.s32.totalorder %s40, 2
      %s42 = scalar_select %p41, 0, %s40
      %s43 = ssub.s32 %s23, %s42
      %s44 = ssub.s32 %s25, %s34
      %s45 = sor.u32 %s43, %s44
      %p46 = scmp.eq.s32.totalorder %s45, 0
      %s48 = sadd.s32 %s47, 1
      %s49 = scalar_select %p46, %s47, %s48
      %p52 = pneg %p46
      %p53 = scmp.eq.s32.totalorder %s16, 1
      %p54 = por %p52, %p53
      %p55 = scmp.ne.s32.totalorder %s47, %s50
      %p56 = scmp.eq.s32.totalorder %s16, 0
      %p57 = por %p55, %p56
      %p58 = scmp.ne.s32.totalorder %s47, %s50
      %p59 = scmp.eq.s32.totalorder %s21, 1
      %p60 = por %p58, %p59
      %p61 = scmp.ne.s32.totalorder %s50, %s51
      %p62 = scmp.eq.s32.totalorder %s21, 0
      %p63 = por %p61, %p62
      %p64 = scmp.ne.s32.totalorder %s50, %s51
      %p65 = scmp.eq.s32.totalorder %s22, 1
      %p66 = por %p64, %p65
      %p68 = scmp.ne.s32.totalorder %s51, %s67
      %p69 = scmp.eq.s32.totalorder %s22, 0
      %p70 = por %p68, %p69
      %s71 = ssub.s32 %s25, %s34
      %s72 = ssub.s32 %s24, %s38
      %s73 = sor.u32 %s71, %s72
      %p74 = scmp.eq.s32.totalorder %s73, 0
      %s76 = sadd.s32 %s75, 1
      %s77 = scalar_select %p74, %s75, %s76
      %p80 = pneg %p74
      %p81 = scmp.eq.s32.totalorder %s16, 1
      %p82 = por %p80, %p81
      %p83 = scmp.ne.s32.totalorder %s75, %s78
      %p84 = scmp.eq.s32.totalorder %s16, 0
      %p85 = por %p83, %p84
      %p86 = scmp.ne.s32.totalorder %s75, %s78
      %p87 = scmp.eq.s32.totalorder %s21, 1
      %p88 = por %p86, %p87
      %p89 = scmp.ne.s32.totalorder %s78, %s79
      %p90 = scmp.eq.s32.totalorder %s21, 0
      %p91 = por %p89, %p90
      %p92 = scmp.ne.s32.totalorder %s78, %s79
      %p93 = scmp.eq.s32.totalorder %s22, 1
      %p94 = por %p92, %p93
      %p96 = scmp.ne.s32.totalorder %s79, %s95
      %p97 = scmp.eq.s32.totalorder %s22, 0
      %p98 = por %p96, %p97
      %s99 = ssub.s32 %s24, %s38
      %p100 = scmp.eq.s32.totalorder %s99, 0
      %s102 = sadd.s32 %s101, 1
      %s103 = scalar_select %p100, %s101, %s102
      %p106 = pneg %p100
      %p107 = scmp.eq.s32.totalorder %s16, 1
      %p108 = por %p106, %p107
      %p109 = scmp.ne.s32.totalorder %s101, %s104
      %p110 = scmp.eq.s32.totalorder %s16, 0
      %p111 = por %p109, %p110
      %p112 = scmp.ne.s32.totalorder %s101, %s104
      %p113 = scmp.eq.s32.totalorder %s21, 1
      %p114 = por %p112, %p113
      %p115 = scmp.ne.s32.totalorder %s104, %s105
      %p116 = scmp.eq.s32.totalorder %s21, 0
      %p117 = por %p115, %p116
      %p118 = scmp.ne.s32.totalorder %s104, %s105
      %p119 = scmp.eq.s32.totalorder %s22, 1
      %p120 = por %p118, %p119
      %p122 = scmp.ne.s32.totalorder %s105, %s121
      %p123 = scmp.eq.s32.totalorder %s22, 0
      %p124 = por %p122, %p123
      %s125 = ssub.s32 %s23, %s42
      %s126 = ssub.s32 %s24, %s38
      %s127 = sor.u32 %s125, %s126
      %p128 = scmp.eq.s32.totalorder %s127, 0
      %s130 = sadd.s32 %s129, 1
      %s131 = scalar_select %p128, %s129, %s130
      %p134 = pneg %p128
      %p135 = scmp.eq.s32.totalorder %s16, 1
      %p136 = por %p134, %p135
      %p137 = scmp.ne.s32.totalorder %s129, %s132
      %p138 = scmp.eq.s32.totalorder %s16, 0
      %p139 = por %p137, %p138
      %p140 = scmp.ne.s32.totalorder %s129, %s132
      %p141 = scmp.eq.s32.totalorder %s21, 1
      %p142 = por %p140, %p141
      %p143 = scmp.ne.s32.totalorder %s132, %s133
      %p144 = scmp.eq.s32.totalorder %s21, 0
      %p145 = por %p143, %p144
      %p146 = scmp.ne.s32.totalorder %s132, %s133
      %p147 = scmp.eq.s32.totalorder %s22, 1
      %p148 = por %p146, %p147
      %p150 = scmp.ne.s32.totalorder %s133, %s149
      %p151 = scmp.eq.s32.totalorder %s22, 0
      %p152 = por %p150, %p151
      %p153 = scmp.le.s32.totalorder 1, %s16
      %p154 = scmp.lt.s32.totalorder %s16, 3
      %p155 = pnand %p153, %p154
      %p156 = pneg %p155
      // Predicated region
      $region9: #{tpu_custom_call.1} parent=5 // pred_check
        _
      $region10: #{tpu_custom_call.1} parent=5 // pred_check_branch
        %158 = sbr.rel (%p155) target = $region12
      $region11: #{tpu_custom_call.1} parent=5 // pred_region
        %s159 = ssub.s32 %s16, 1
        // Predicated region
        $region13: #{tpu_custom_call.1} parent=11 // pred_check
          %p160 = pneg %p91
        $region14: #{tpu_custom_call.1} parent=11 // pred_check_branch
          %162 = sbr.rel (%p160) target = $region16
        $region15: #{tpu_custom_call.1} parent=11 // pred_region
          %s163 = smul.u32 4, %s28
          %s165 = ssub.s32 512, 512
          %166 = vsyncadd [#allocation7], %s165
          %s167 = sadd.s32 %s27, %s163
          %s168 = smul.addr %s167, 128
          %s169 = scalar_lea.hbm %s1, %s168
          %s170 = sshll.u32 [#allocation6], 4
          %s171 = int_to_ptr.vmem [resolvable:$true] %s170
          %176 = dma.hbm_to_vmem [thread:$0]  %s169, 512, %s171, [#allocation7], 128, 128, 8
        $region16: #{tpu_custom_call.1} parent=11 // pred_fallthru
          _
        // Predicated region
        $region17: #{tpu_custom_call.1} parent=11 // pred_check
          %p177 = pneg %p117
        $region18: #{tpu_custom_call.1} parent=11 // pred_check_branch
          %179 = sbr.rel (%p177) target = $region20
        $region19: #{tpu_custom_call.1} parent=11 // pred_region
          %p180 = scmp.lt.s32.totalorder %s27, 0
          %s181 = scalar_select %p180, %s27, 0
          %s182 = scalar_lea.vmem %s2, %s181
        $region20: #{tpu_custom_call.1} parent=11 // pred_fallthru
          _
      $region12: #{tpu_custom_call.1} parent=5 // pred_fallthru
        _
      %p183 = scmp.lt.s32.totalorder %s16, 2
      // Predicated region
      $region21: #{tpu_custom_call.1} parent=5 // pred_check
        %p184 = pneg %p183
      $region22: #{tpu_custom_call.1} parent=5 // pred_check_branch
        %186 = sbr.rel (%p184) target = $region24
      $region23: #{tpu_custom_call.1} parent=5 // pred_region
        // Predicated region
        $region25: #{tpu_custom_call.1} parent=23 // pred_check
          %p187 = pneg %p57
        $region26: #{tpu_custom_call.1} parent=23 // pred_check_branch
          %189 = sbr.rel (%p187) target = $region28
        $region27: #{tpu_custom_call.1} parent=23 // pred_region
          %s190 = sand.u32 %s47, 1
          %s191 = scalar_lea.sflag [#allocation4], %s190
          %s192 = sand.u32 %s47, 1
          %s193 = smul.addr %s192, 8
          %s194 = scalar_lea.vmem [#allocation3], %s193
          %s196 = ssub.s32 128, 128
          %197 = vsyncadd %s191, %s196
          %s198 = sadd.s32 %s25, %s23
          %s199 = smul.addr %s198, 128
          %s200 = scalar_lea.hbm %s0, %s199
          %s202 = sshll.u32 %s194, 4
          %s203 = int_to_ptr.vmem [resolvable:$true] %s202
          %205 = dma.hbm_to_vmem [thread:$0]  %s200, 128, %s203, %s191
        $region28: #{tpu_custom_call.1} parent=23 // pred_fallthru
          _
      $region24: #{tpu_custom_call.1} parent=5 // pred_fallthru
        _
      %p206 = scmp.le.s32.totalorder 1, %s16
      %p207 = scmp.lt.s32.totalorder %s16, 3
      %p208 = pnand %p206, %p207
      %p209 = pneg %p208
      // Predicated region
      $region29: #{tpu_custom_call.1} parent=5 // pred_check
        _
      $region30: #{tpu_custom_call.1} parent=5 // pred_check_branch
        %211 = sbr.rel (%p208) target = $region32
      $region31: #{tpu_custom_call.1} parent=5 // pred_region
        %s212 = ssub.s32 %s16, 1
        %s213 = sand.u32 %s50, 1
        %s214 = scalar_lea.sflag [#allocation4], %s213
        %s215 = sand.u32 %s50, 1
        %s216 = smul.addr %s215, 8
        %s217 = scalar_lea.vmem [#allocation3], %s216
        // Predicated region
        $region33: #{tpu_custom_call.1} parent=31 // pred_check
          %p218 = pneg %p63
        $region34: #{tpu_custom_call.1} parent=31 // pred_check_branch
          %220 = sbr.rel (%p218) target = $region36
        $region35: #{tpu_custom_call.1} parent=31 // pred_region
          %221 = dma.done %s214, 128
        $region36: #{tpu_custom_call.1} parent=31 // pred_fallthru
          _
        // Predicated region
        $region37: #{tpu_custom_call.1} parent=31 // pred_check
          %p222 = pneg %p91
        $region38: #{tpu_custom_call.1} parent=31 // pred_check_branch
          %224 = sbr.rel (%p222) target = $region40
        $region39: #{tpu_custom_call.1} parent=31 // pred_region
          %225 = dma.done [#allocation7], 512
        $region40: #{tpu_custom_call.1} parent=31 // pred_fallthru
          _
        %s226 = sand.u32 %s50, 1
        %s227 = scalar_lea.sflag [#allocation4], %s226
        %s228 = sand.u32 %s50, 1
        %s229 = smul.addr %s228, 8
        %s230 = scalar_lea.vmem [#allocation3], %s229
        %p231 = pneg %p63
        %p232 = pneg %p60
        %p233 = pneg %p91
        %p234 = pneg %p88
        %p235 = scmp.lt.s32.totalorder %s27, 0
        %s236 = scalar_select %p235, %s27, 0
        %s237 = scalar_lea.vmem %s2, %s236
        %p238 = pneg %p117
        %p239 = pneg %p114
        %p240 = pneg %p145
        %p241 = pneg %p142
        %s242 = sand.u32 %s132, 1
        %s243 = scalar_lea.sflag [#allocation5], %s242
        %s244 = sand.u32 %s132, 1
        %s245 = smul.addr %s244, 8
        %s246 = scalar_lea.vmem [#allocation8], %s245
        %s247 = smul.u32 4, %s28
        %p248 = scmp.lt.s32.totalorder %s27, 0
        %s249 = scalar_select %p248, %s27, 0
        %s250 = scalar_lea.vmem %s2, %s249
        %v251 = vld [vmem:[%s217] sm:$0xff]
        %v252 = vld [vmem:[#allocation6] sm:$0xff]
        %v253 = vld [vmem:[#allocation6 + $0x8] sm:$0xff]
        %v254 = vld [vmem:[#allocation6 + $0x10] sm:$0xff]
        %v255 = vld [vmem:[#allocation6 + $0x18] sm:$0xff]
        %vm256 = vcmask 261120
        %v258 = vsel %vm256, %v251, 0
        %260 = vmatprep.subr.mxu0 0.0
        %261 = vmatpush1.msra.mxu0 %v252
        %262 = vmatprep.subr.mxu0 0.0
        %263 = vmatpush1.msra.mxu0 %v253
        %264 = vmatprep.subr.mxu0 0.0
        %265 = vmatpush1.msra.mxu0 %v254
        %266 = vmatprep.subr.mxu0 0.0
        %267 = vmatpush1.msra.mxu0 %v255
        %268 = vmatprep.subr.mxu0 0.0
        %269 = vmatpush1.msra.mxu0 0.0
        %270 = vmatprep.subr.mxu0 0.0
        %271 = vmatpush1.msra.mxu0 0.0
        %272 = vmatprep.subr.mxu0 0.0
        %273 = vmatpush1.msra.mxu0 0.0
        %274 = vmatprep.subr.mxu0 0.0
        %275 = vmatpush1.msra.mxu0 0.0
        %276 = vmatprep.subr.mxu0 0.0
        %277 = vmatpush1.msra.mxu0 0.0
        %278 = vmatprep.subr.mxu0 0.0
        %279 = vmatpush1.msra.mxu0 0.0
        %280 = vmatprep.subr.mxu0 0.0
        %281 = vmatpush1.msra.mxu0 0.0
        %282 = vmatprep.subr.mxu0 0.0
        %283 = vmatpush1.msra.mxu0 0.0
        %284 = vmatprep.subr.mxu0 0.0
        %285 = vmatpush1.msra.mxu0 0.0
        %286 = vmatprep.subr.mxu0 0.0
        %287 = vmatpush1.msra.mxu0 0.0
        %288 = vmatprep.subr.mxu0 0.0
        %289 = vmatpush1.msra.mxu0 0.0
        %290 = vmatprep.subr.mxu0 0.0
        %291 = vmatpush1.msra.mxu0 0.0
        %292 = vmatprep.subr.mxu0 0.0
        %293 = vmatpush1.msra.mxu0 0.0
        %294 = vmatprep.subr.mxu0 0.0
        %295 = vmatpush1.msra.mxu0 0.0
        %296 = vmatprep.subr.mxu0 0.0
        %297 = vmatpush1.msra.mxu0 0.0
        %298 = vmatprep.subr.mxu0 0.0
        %299 = vmatpush1.msra.mxu0 0.0
        %300 = vmatprep.subr.mxu0 0.0
        %301 = vmatpush1.msra.mxu0 0.0
        %302 = vmatprep.subr.mxu0 0.0
        %303 = vmatpush1.msra.mxu0 0.0
        %304 = vmatprep.subr.mxu0 0.0
        %305 = vmatpush1.msra.mxu0 0.0
        %306 = vmatprep.subr.mxu0 0.0
        %307 = vmatpush1.msra.mxu0 0.0
        %308 = vmatprep.subr.mxu0 0.0
        %309 = vmatpush1.msra.mxu0 0.0
        %310 = vmatprep.subr.mxu0 0.0
        %311 = vmatpush1.msra.mxu0 0.0
        %312 = vmatprep.subr.mxu0 0.0
        %313 = vmatpush1.msra.mxu0 0.0
        %314 = vmatprep.subr.mxu0 0.0
        %315 = vmatpush1.msra.mxu0 0.0
        %316 = vmatprep.subr.mxu0 0.0
        %317 = vmatpush1.msra.mxu0 0.0
        %318 = vmatprep.subr.mxu0 0.0
        %319 = vmatpush1.msra.mxu0 0.0
        %320 = vmatprep.subr.mxu0 0.0
        %321 = vmatpush1.msra.mxu0 0.0
        %322 = vmatprep.subr.mxu0 0.0
        %323 = vmatpush1.msra.mxu0 0.0
        %324 = vmatprep.mubr.f32.mxu0 0.0
        %325 = vmatmul.mubr.f32.gmra.mrb[0].mxu0 %v258
        %v326 = vpop.f32.mrb[0].mxu0
        %v327 = vadd.f32 0.0, %v326
        %v328 = vpop.f32.mrb[0].mxu0
        %329 = vdwg.mxu0
        %p330 = scmp.eq.s32.totalorder %s28, 0
        // Predicated region
        $region41: #{tpu_custom_call.1} parent=31 // pred_check
          %p331 = pneg %p330
        $region42: #{tpu_custom_call.1} parent=31 // pred_check_branch
          %333 = sbr.rel (%p331) target = $region44
        $region43: #{tpu_custom_call.1} parent=31 // pred_region
          %334 = vst.msk [vmem:[#allocation2] sm:$0xff] %vm256, %v327
        $region44: #{tpu_custom_call.1} parent=31 // pred_fallthru
          _
        %p335 = scmp.gt.s32.totalorder %s28, 0
        // Predicated region
        $region45: #{tpu_custom_call.1} parent=31 // pred_check
          %p336 = pneg %p335
        $region46: #{tpu_custom_call.1} parent=31 // pred_check_branch
          %338 = sbr.rel (%p336) target = $region48
        $region47: #{tpu_custom_call.1} parent=31 // pred_region
          %v339 = vld [vmem:[#allocation2] sm:$0xff]
          %v340 = vadd.f32 %v339, %v327
          %341 = vst.msk [vmem:[#allocation2] sm:$0xff] %vm256, %v340
        $region48: #{tpu_custom_call.1} parent=31 // pred_fallthru
          _
        // Predicated region
        $region49: #{tpu_custom_call.1} parent=31 // pred_check
          %p342 = pneg %p330
        $region50: #{tpu_custom_call.1} parent=31 // pred_check_branch
          %344 = sbr.rel (%p342) target = $region52
        $region51: #{tpu_custom_call.1} parent=31 // pred_region
          %v345 = vld [vmem:[#allocation2] sm:$0xff]
          %v346 = vld [vmem:[%s250] sm:$0x1]
          %v348 = vlaneseq
          %v349 = vshrl.u32 %v348, 7
          %v350 = vsub.s32 0, %v349
          %v351 = vrot.slane %v346, %v350
          %v353 = vadd.f32 %v345, %v351
          %354 = vst.msk [vmem:[%s246] sm:$0xff] %vm256, %v353
        $region52: #{tpu_custom_call.1} parent=31 // pred_fallthru
          _
        %s355 = sand.u32 %s132, 1
        %s356 = scalar_lea.sflag [#allocation5], %s355
        %s357 = sand.u32 %s132, 1
        %s358 = smul.addr %s357, 8
        %s359 = scalar_lea.vmem [#allocation8], %s358
        // Predicated region
        $region53: #{tpu_custom_call.1} parent=31 // pred_check
          %p360 = pneg %p142
        $region54: #{tpu_custom_call.1} parent=31 // pred_check_branch
          %362 = sbr.rel (%p360) target = $region56
        $region55: #{tpu_custom_call.1} parent=31 // pred_region
          %s364 = ssub.s32 128, 128
          %365 = vsyncadd %s356, %s364
          %s366 = sadd.s32 %s27, %s26
          %s367 = smul.addr %s366, 128
          %s368 = scalar_lea.hbm %s3, %s367
          %s370 = sshll.u32 %s359, 4
          %s371 = int_to_ptr.vmem [resolvable:$true] %s370
          %373 = dma.vmem_to_hbm [thread:$0]  %s371, 128, %s368, %s356
        $region56: #{tpu_custom_call.1} parent=31 // pred_fallthru
          _
      $region32: #{tpu_custom_call.1} parent=5 // pred_fallthru
        _
      %p374 = scmp.le.s32.totalorder 2, %s16
      // Predicated region
      $region57: #{tpu_custom_call.1} parent=5 // pred_check
        %p375 = pneg %p374
      $region58: #{tpu_custom_call.1} parent=5 // pred_check_branch
        %377 = sbr.rel (%p375) target = $region60
      $region59: #{tpu_custom_call.1} parent=5 // pred_region
        %s378 = ssub.s32 %s16, 2
        // Predicated region
        $region61: #{tpu_custom_call.1} parent=59 // pred_check
          %p379 = pneg %p148
        $region62: #{tpu_custom_call.1} parent=59 // pred_check_branch
          %381 = sbr.rel (%p379) target = $region64
        $region63: #{tpu_custom_call.1} parent=59 // pred_region
          %s382 = sand.u32 %s133, 1
          %s383 = scalar_lea.sflag [#allocation5], %s382
          %s384 = sand.u32 %s133, 1
          %s385 = smul.addr %s384, 8
          %s386 = scalar_lea.vmem [#allocation8], %s385
          %387 = dma.done %s383, 128
        $region64: #{tpu_custom_call.1} parent=59 // pred_fallthru
          _
      $region60: #{tpu_custom_call.1} parent=5 // pred_fallthru
        _
    $region6: #{tpu_custom_call.1} parent=1 // loop_footer
      %s20 = sadd.s32 1, %s16
    $region7: #{tpu_custom_call.1} parent=1 // loop_footer_branch
      %15 = sbr.rel target = $region3
    $region8: #{tpu_custom_call.1} parent=1 // loop_exit
      _
    %388 = vsyncpa [#allocation4], 1
    %s389 = scalar_lea.sflag [#allocation4], 1
    %390 = vsyncpa %s389, 1
    %391 = vsyncpa [#allocation7], 1
    %392 = vsyncpa [#allocation5], 1
    %s393 = scalar_lea.sflag [#allocation5], 1
    %394 = vsyncpa %s393, 1

</llo_original>
